<compile_context>
chip_gen: v6e
topology: v6e:2x2x1
jax: 0.10.0
libtpu: 0.0.40
codegen_flags: <defaults>
</compile_context>

<pallas_src>
import functools

import jax
import jax.numpy as jnp
from jax import lax
from jax.experimental import pallas as pl
from jax.experimental.pallas import tpu as pltpu

LOWER = 1.0 / 8
UPPER = 1.0 / 3

_TARGET_BLOCK_BYTES = 2 * 1024 * 1024  # ~2 MiB per block buffer


def _rrelu_eval_kernel(x_ref, o_ref, *, neg_slope):
    x = x_ref[...]
    # scalar constant slope (no full-tile broadcast materialization needed)
    o_ref[...] = jnp.where(x >= 0, x, x * neg_slope)


def _hash_u32(idx_u32, seed_u32):
    """lowbias32 integer mixer -> well-decorrelated 32 random bits per element."""
    h = idx_u32 ^ seed_u32
    h = h ^ (h >> 16)
    h = h * jnp.uint32(0x7FEB352D)
    h = h ^ (h >> 15)
    h = h * jnp.uint32(0x846CA68B)
    h = h ^ (h >> 16)
    return h


def _rrelu_train_kernel(seed_ref, x_ref, o_ref, *, lower, upper, block_rows, width):
    x = x_ref[...]

    # Global element index for this block (counter-based, stateless PRNG).
    row0 = pl.program_id(0) * block_rows
    rows = lax.broadcasted_iota(jnp.int32, x.shape, 0) + row0
    cols = lax.broadcasted_iota(jnp.int32, x.shape, 1)
    idx = rows * width + cols
    idx_u = lax.bitcast_convert_type(idx, jnp.uint32)
    seed_u = lax.bitcast_convert_type(seed_ref[0], jnp.uint32)

    bits = _hash_u32(idx_u, seed_u)

    # Mantissa trick: bits -> float in [1, 2), subtract 1 -> uniform [0, 1).
    mant = (bits >> 9) | jnp.uint32(0x3F800000)
    u01 = lax.bitcast_convert_type(mant, jnp.float32) - 1.0
    slope = u01 * (upper - lower) + lower  # Uniform[lower, upper)

    xf = x.astype(jnp.float32)
    neg = (xf * slope).astype(x.dtype)
    o_ref[...] = jnp.where(x >= 0, x, neg)


def _choose_layout(n, itemsize):
    """Pick a lane-dense slab width and block row count."""
    padded = False
    for width in (1024, 512, 256, 128):
        if n % width == 0:
            break
    else:
        width = 128
        padded = True
    rows = pl.cdiv(n, width)

    target_elems = max(1, _TARGET_BLOCK_BYTES // itemsize)
    block_rows = min(rows, max(1, target_elems // width))
    if block_rows < rows:
        # multiple of 16 rows: satisfies f32 (8) and bf16/fp16 (16) sublane packing
        block_rows = max(16, (block_rows // 16) * 16)
    return width, rows, block_rows, padded


def rrelu(x, lower=LOWER, upper=UPPER, training=False, seed=0):
    """RReLU forward. Works for any input shape (elementwise)."""
    orig_shape = x.shape
    dtype = x.dtype
    n = x.size
    if n == 0:
        return x

    width, rows, block_rows, padded = _choose_layout(n, jnp.dtype(dtype).itemsize)

    flat = x.reshape(-1)
    if padded:
        flat = jnp.pad(flat, (0, rows * width - n))
    x2d = flat.reshape(rows, width)

    grid = (pl.cdiv(rows, block_rows),)
    blk = (block_rows, width)
    compiler_params = pltpu.CompilerParams(
        dimension_semantics=("parallel",)  # stateless per-element hash -> safe
    )

    if training:
        kernel = functools.partial(
            _rrelu_train_kernel,
            lower=float(lower),
            upper=float(upper),
            block_rows=block_rows,
            width=width,
        )
        seed_arr = jnp.asarray([seed], dtype=jnp.int32)
        out2d = pl.pallas_call(
            kernel,
            out_shape=jax.ShapeDtypeStruct(x2d.shape, dtype),
            grid=grid,
            in_specs=[
                pl.BlockSpec(memory_space=pltpu.SMEM),      # seed scalar
                pl.BlockSpec(blk, lambda i: (i, 0)),        # x block
            ],
            out_specs=pl.BlockSpec(blk, lambda i: (i, 0)),
            compiler_params=compiler_params,
        )(seed_arr, x2d)
    else:
        kernel = functools.partial(
            _rrelu_eval_kernel, neg_slope=0.5 * (float(lower) + float(upper))
        )
        out2d = pl.pallas_call(
            kernel,
            out_shape=jax.ShapeDtypeStruct(x2d.shape, dtype),
            grid=grid,
            in_specs=[pl.BlockSpec(blk, lambda i: (i, 0))],
            out_specs=pl.BlockSpec(blk, lambda i: (i, 0)),
            compiler_params=compiler_params,
        )(x2d)

    if padded:
        return out2d.reshape(-1)[:n].reshape(orig_shape)
    return out2d.reshape(orig_shape)


if __name__ == "__main__":
    key = jax.random.PRNGKey(0)
    # Small NCHW input consistent with typical activation usage.
    x = jax.random.normal(key, (2, 4, 16, 16), dtype=jnp.float32)

    # --- eval mode (deterministic negative slope) ---
    y_eval = rrelu(x, training=False)
    jax.block_until_ready(y_eval)
    slope = 0.5 * (LOWER + UPPER)
    ref = jnp.where(x >= 0, x, x * slope)
    assert jnp.allclose(y_eval, ref, atol=1e-6, rtol=1e-6), "eval-mode mismatch"

    # --- training mode (random per-element slope in [lower, upper)) ---
    y_train = rrelu(x, training=True, seed=1234)
    jax.block_until_ready(y_train)
    # positive elements pass through unchanged
    pos = x >= 0
    assert jnp.allclose(jnp.where(pos, y_train, 0.0), jnp.where(pos, x, 0.0)), \
        "training-mode positive passthrough mismatch"
    # negative elements are scaled by a slope within [lower, upper]
    neg = ~pos
    eff_slope = jnp.where(neg, y_train / jnp.where(neg, x, 1.0), 0.5 * (LOWER + UPPER))
    assert bool(jnp.all((eff_slope >= LOWER - 1e-5) & (eff_slope <= UPPER + 1e-5))), \
        "training-mode slope out of [lower, upper]"

    print("KERNEL_OK")
</pallas_src>

<mosaic_0001>
module attributes {stable_mosaic.version = 11 : i64} {
  func.func @_rrelu_eval_kernel(%arg0: i32, %arg1: memref<2x1024xf32, #tpu.memory_space<vmem>>, %arg2: memref<2x1024xf32, #tpu.memory_space<vmem>>) attributes {dimension_semantics = [#tpu.dimension_semantics<parallel>], iteration_bounds = array<i64: 1>, scalar_prefetch = 0 : i64, scratch_operands = 0 : i64, tpu.core_type = #tpu.core_type<tc>, window_params = [{transform_indices = @transform_0, window_bounds = array<i64: 2, 1024>}, {transform_indices = @transform_1, window_bounds = array<i64: 2, 1024>}]} {
    %c0 = arith.constant 0 : index
    %c0_0 = arith.constant 0 : index
    %0 = vector.load %arg1[%c0, %c0_0] : memref<2x1024xf32, #tpu.memory_space<vmem>>, vector<2x1024xf32>
    %cst = arith.constant 0.000000e+00 : f32
    %1 = vector.broadcast %cst : f32 to vector<2x1024xf32>
    %2 = arith.cmpf oge, %0, %1 : vector<2x1024xf32>
    %cst_1 = arith.constant 0.229166672 : f32
    %3 = vector.broadcast %cst_1 : f32 to vector<2x1024xf32>
    %4 = arith.mulf %0, %3 : vector<2x1024xf32>
    %5 = arith.select %2, %0, %4 : vector<2x1024xi1>, vector<2x1024xf32>
    %c0_2 = arith.constant 0 : index
    %c0_3 = arith.constant 0 : index
    %6 = vector.load %arg2[%c0_2, %c0_3] : memref<2x1024xf32, #tpu.memory_space<vmem>>, vector<2x1024xf32>
    tpu.vector_store %arg2[%c0_2, %c0_3], %5 {strides = array<i32>} : memref<2x1024xf32, #tpu.memory_space<vmem>>, vector<2x1024xf32>,
    return
  }
  func.func @transform_0(%arg0: i32) -> (i32, i32) {
    %c0_i32 = arith.constant 0 : i32
    %c0_i32_0 = arith.constant 0 : i32
    return %arg0, %c0_i32 : i32, i32
  }
  func.func @transform_1(%arg0: i32) -> (i32, i32) {
    %c0_i32 = arith.constant 0 : i32
    %c0_i32_0 = arith.constant 0 : i32
    return %arg0, %c0_i32 : i32, i32
  }
}

</mosaic_0001>

<llo_original>
// kernel: tpu_custom_call.1
$region0: #{tpu_custom_call.1}
  #allocation0 [shape = 'u32[]', space=smem, size = 0x4, offset = 0x4, fixed_abs, tag = 'smem constant byte address 0x4 - core index']
  #allocation1 [shape = 'u32[144,128]{1,0:T(1,128)}', space=vmem, size = 0x12000, scoped, tag = 'internal scratch']
  %s0 = inlined_call_operand.hbm [shape: f32[2,1024], index: 0, kind: input, shape index: {}]
  %s1 = inlined_call_operand.hbm [shape: f32[2,1024], index: 1, kind: output, shape index: {}]
  %s2 = sld [smem:[#allocation0]]
  $region18: #{tpu_custom_call.1} parent=0
    _
  %s4 = ssub.s32 1, %s2
  %s5 = scalar_select 0, %s4, %s2
  $region1: #{tpu_custom_call.1} parent=0
    #allocation2 [shape = 'u8[8192]{0}', space=vmem, size = 0x2000, scoped, tag = 'input window, operand 0, single buffered']
    #allocation3 [shape = 's32[1]{0}', space=sflag, size = 0x4, scoped, tag = 'scoped memory for tpu_custom_call.1']
    #allocation4 [shape = 's32[1]{0}', space=sflag, size = 0x4, scoped, tag = 'scoped memory for tpu_custom_call.1']
    #allocation5 [shape = 'u8[8192]{0}', space=vmem, size = 0x2000, scoped, tag = 'output window, operand 0, single buffered']
    %6 = vsyncpa [#allocation3], 0
    %7 = vsyncpa [#allocation4], 0
    // Predicated region
    $region2: #{tpu_custom_call.1} parent=1 // pred_check
      _
    $region3: #{tpu_custom_call.1} parent=1 // pred_check_branch
      %9 = sbr.rel (0) target = $region5
    $region4: #{tpu_custom_call.1} parent=1 // pred_region
      %s11 = ssub.s32 256, 256
      %12 = vsyncadd [#allocation3], %s11
      %s14 = sshll.u32 [#allocation2], 4
      %s15 = int_to_ptr.vmem [resolvable:$true] %s14
      %17 = dma.hbm_to_vmem [thread:$0]  %s0, 256, %s15, [#allocation3]
    $region5: #{tpu_custom_call.1} parent=1 // pred_fallthru
      _
    // Predicated region
    $region6: #{tpu_custom_call.1} parent=1 // pred_check
      _
    $region7: #{tpu_custom_call.1} parent=1 // pred_check_branch
      %19 = sbr.rel (0) target = $region9
    $region8: #{tpu_custom_call.1} parent=1 // pred_region
      %20 = dma.done [#allocation3], 256
    $region9: #{tpu_custom_call.1} parent=1 // pred_fallthru
      _
    %v21 = vld [vmem:[#allocation2] sm:$0xff]
    %v22 = vld [vmem:[#allocation2 + $0x8] sm:$0xff]
    %vm23 = vcmp.ge.f32.partialorder %v21, 0.0
    %vm24 = vcmp.ge.f32.partialorder %v22, 0.0
    %v25 = vmul.f32 %v21, 0.22916667
    %v26 = vmul.f32 %v22, 0.22916667
    %v27 = vsel %vm23, %v21, %v25
    %v28 = vsel %vm24, %v22, %v26
    %29 = vst [vmem:[#allocation5] sm:$0xff] %v27
    %30 = vst [vmem:[#allocation5 + $0x8] sm:$0xff] %v28
    // Predicated region
    $region10: #{tpu_custom_call.1} parent=1 // pred_check
      _
    $region11: #{tpu_custom_call.1} parent=1 // pred_check_branch
      %32 = sbr.rel (0) target = $region13
    $region12: #{tpu_custom_call.1} parent=1 // pred_region
      %s34 = ssub.s32 256, 256
      %35 = vsyncadd [#allocation4], %s34
      %s37 = sshll.u32 [#allocation5], 4
      %s38 = int_to_ptr.vmem [resolvable:$true] %s37
      %40 = dma.vmem_to_hbm [thread:$0]  %s38, 256, %s1, [#allocation4]
    $region13: #{tpu_custom_call.1} parent=1 // pred_fallthru
      _
    // Predicated region
    $region14: #{tpu_custom_call.1} parent=1 // pred_check
      _
    $region15: #{tpu_custom_call.1} parent=1 // pred_check_branch
      %42 = sbr.rel (0) target = $region17
    $region16: #{tpu_custom_call.1} parent=1 // pred_region
      %43 = dma.done [#allocation4], 256
    $region17: #{tpu_custom_call.1} parent=1 // pred_fallthru
      _
    %44 = vsyncpa [#allocation3], 1
    %45 = vsyncpa [#allocation4], 1

</llo_original>
